<compile_context>
chip_gen: v5e
topology: v5e:2x2
jax: 0.10.0
libtpu: 0.0.40
codegen_flags: <defaults>
</compile_context>

<pallas_src>
import functools

import jax
import jax.numpy as jnp
from jax import lax
from jax.experimental import pallas as pl
from jax.experimental.pallas import tpu as pltpu

EPS = 1e-5
LANE = 128
VMEM_LIMIT = 48 * 1024 * 1024        # headroom on v7x (64 MiB); well under v5e/v6e 128 MiB
ROW_TILE_BUDGET = 24 * 1024 * 1024   # target double-buffered activation footprint per pass


def _round_up(x, m):
    return (x + m - 1) // m * m


def _pick_row_tile(rows, bytes_per_row, budget=ROW_TILE_BUDGET, cap=1024):
    """Largest multiple of 8 dividing `rows`, capped by VMEM budget and `cap`."""
    assert rows % 8 == 0, "N*H*W must be a multiple of 8"
    tile = min(rows, cap, max(8, (budget // (2 * bytes_per_row)) // 8 * 8))
    tile -= tile % 8
    tile = max(tile, 8)
    while rows % tile != 0:
        tile -= 8
    return tile


# ---------------------------------------------------------------------------
# In-kernel helpers
# ---------------------------------------------------------------------------
def _write_stats(y_f32, sum_ref, sumsq_ref):
    """Two-phase BN, phase 1: per-grid-step *partial* sums (write-once).

    Each grid step writes its own (1, 8, C) block, so there is no cross-step
    accumulation dependency and the grid axis can be 'parallel' (megacore).
    Row 0 of the 8-row block carries the data; broadcasting keeps the store an
    (8,128)-aligned full tile.
    """
    s = jnp.sum(y_f32, axis=0, keepdims=True)
    ss = jnp.sum(y_f32 * y_f32, axis=0, keepdims=True)
    sum_ref[...] = jnp.broadcast_to(s[None], sum_ref.shape)
    sumsq_ref[...] = jnp.broadcast_to(ss[None], sumsq_ref.shape)


# ---------------------------------------------------------------------------
# Pallas kernels
# ---------------------------------------------------------------------------
def _conv1_kernel(x_ref, w_ref, y_ref, sum_ref, sumsq_ref):
    # conv1 (1x1) == channel matmul on the MXU (bf16 operands, f32 accum).
    y = jnp.dot(x_ref[...], w_ref[...], preferred_element_type=jnp.float32)
    y_ref[...] = y.astype(y_ref.dtype)          # bf16 store (halves HBM write)
    _write_stats(y, sum_ref, sumsq_ref)          # stats from f32 accumulator


def _bnrelu_conv_kernel(x_ref, scale_ref, shift_ref, w_ref, y_ref, sum_ref, sumsq_ref):
    # bn (precomputed scale/shift) + relu in f32, then 1x1 conv on the MXU.
    z = jnp.maximum(x_ref[...].astype(jnp.float32) * scale_ref[...] + shift_ref[...], 0.0)
    y = jnp.dot(z.astype(jnp.bfloat16), w_ref[...], preferred_element_type=jnp.float32)
    y_ref[...] = y.astype(y_ref.dtype)
    _write_stats(y, sum_ref, sumsq_ref)


def _bn_relu_conv3x3_kernel(y1_ref, scale_ref, shift_ref, w2_ref,
                            y2_ref, sum_ref, sumsq_ref,
                            zpad_ref, *, H, W, pad):
    """bn1+relu, then 3x3 'same' conv as 9 shifted-row-window matmuls.

    One grid step == one image (HW rows).  The normalized activation is staged
    into a zero-padded VMEM scratch; each tap (dy, dx) is a static row-window
    at offset dy*W+dx (no HBM im2col).  Column wraps (j+dx out of range) are
    zeroed with an iota mask; row overflows land in the zero halo rows.  Only
    the halo rows are zeroed per step — the interior is fully overwritten.
    """
    HW = H * W
    Pp = w2_ref.shape[2]

    z = jnp.maximum(y1_ref[...].astype(jnp.float32) * scale_ref[...] + shift_ref[...], 0.0)

    zeros_pad = jnp.zeros((pad, Pp), jnp.float32)
    zpad_ref[0:pad, :] = zeros_pad
    zpad_ref[pad + HW:pad + HW + pad, :] = zeros_pad
    zpad_ref[pad:pad + HW, :] = z

    ridx = lax.broadcasted_iota(jnp.int32, (HW, 1), 0)
    col = ridx % W
    col_mask = {-1: col >= 1, 0: None, 1: col <= (W - 2)}

    acc = jnp.zeros((HW, Pp), jnp.float32)
    t = 0
    for dy in (-1, 0, 1):
        for dx in (-1, 0, 1):
            s = dy * W + dx
            tap = zpad_ref[pad + s:pad + s + HW, :]          # (HW, Pp) f32
            m = col_mask[dx]
            if m is not None:
                tap = jnp.where(m, tap, 0.0)
            acc = acc + jnp.dot(tap.astype(jnp.bfloat16), w2_ref[t],
                                preferred_element_type=jnp.float32)
            t += 1

    y2_ref[...] = acc.astype(y2_ref.dtype)       # bf16 store
    _write_stats(acc, sum_ref, sumsq_ref)


def _bn_res_relu_kernel(y3_ref, x_ref, scale_ref, shift_ref, o_ref):
    # bn3 + residual add + relu (f32 math, lane-dense output).
    o_ref[...] = jnp.maximum(
        y3_ref[...].astype(jnp.float32) * scale_ref[...] + shift_ref[...] + x_ref[...], 0.0)


# ---------------------------------------------------------------------------
# Host glue
# ---------------------------------------------------------------------------
def _bn_affine(s_part, ss_part, count, gamma, beta):
    """Reduce per-step partial stats and finalize per-channel scale/shift."""
    s = jnp.sum(s_part[:, 0, :], axis=0, keepdims=True)
    ss = jnp.sum(ss_part[:, 0, :], axis=0, keepdims=True)
    mean = s / count
    var = jnp.maximum(ss / count - mean * mean, 0.0)
    scale = gamma * lax.rsqrt(var + EPS)
    shift = beta - mean * scale
    return scale, shift


def bottleneck_forward(x_nchw, params):
    N, Cin, H, W = x_nchw.shape
    P = params["w1"].shape[0]               # planes
    Cout = params["w3"].shape[0]            # planes * expansion
    assert Cout == Cin, "residual add requires inplanes == planes*expansion (dim_change=None)"
    HW = H * W
    R = N * HW
    assert HW % 8 == 0, "H*W must be a multiple of 8"

    Cp = _round_up(Cin, LANE)               # padded in/out channels (Cin == Cout)
    Pp = _round_up(P, LANE)                 # padded bottleneck width

    # --- layout glue: NCHW -> NHWC -> (rows, C), zero-pad channels to 128 ---
    x_nhwc = jnp.transpose(x_nchw, (0, 2, 3, 1)).astype(jnp.float32)
    x_flat = jnp.pad(x_nhwc.reshape(R, Cin), ((0, 0), (0, Cp - Cin)))   # f32 (residual)
    x_bf16 = x_flat.astype(jnp.bfloat16)                                # pass-1 input

    w1 = jnp.pad(jnp.transpose(params["w1"][:, :, 0, 0], (1, 0)),
                 ((0, Cp - Cin), (0, Pp - P))).astype(jnp.bfloat16)              # (Cp, Pp)
    w2 = jnp.pad(jnp.transpose(params["w2"], (2, 3, 1, 0)).reshape(9, P, P),
                 ((0, 0), (0, Pp - P), (0, Pp - P))).astype(jnp.bfloat16)        # (9, Pp, Pp)
    w3 = jnp.pad(jnp.transpose(params["w3"][:, :, 0, 0], (1, 0)),
                 ((0, Pp - P), (0, Cp - Cout))).astype(jnp.bfloat16)             # (Pp, Cp)

    def padvec(v, n):
        return jnp.pad(v.astype(jnp.float32), (0, n - v.shape[0])).reshape(1, n)

    g1, b1 = padvec(params["g1"], Pp), padvec(params["b1"], Pp)
    g2, b2 = padvec(params["g2"], Pp), padvec(params["b2"], Pp)
    g3, b3 = padvec(params["g3"], Cp), padvec(params["b3"], Cp)

    # Row tile sized by the heaviest pass (pass 4: bf16 + 2x f32 per row of Cp).
    TR = _pick_row_tile(R, bytes_per_row=Cp * 10)
    G = R // TR

    cp_par = pltpu.CompilerParams(dimension_semantics=("parallel",),
                                  vmem_limit_bytes=VMEM_LIMIT)

    # --- pass 1: conv1 (1x1) + bn1 partial stats ---
    y1, s1, ss1 = pl.pallas_call(
        _conv1_kernel,
        grid=(G,),
        in_specs=[pl.BlockSpec((TR, Cp), lambda i: (i, 0)),
                  pl.BlockSpec((Cp, Pp), lambda i: (0, 0))],
        out_specs=(pl.BlockSpec((TR, Pp), lambda i: (i, 0)),
                   pl.BlockSpec((1, 8, Pp), lambda i: (i, 0, 0)),
                   pl.BlockSpec((1, 8, Pp), lambda i: (i, 0, 0))),
        out_shape=(jax.ShapeDtypeStruct((R, Pp), jnp.bfloat16),
                   jax.ShapeDtypeStruct((G, 8, Pp), jnp.float32),
                   jax.ShapeDtypeStruct((G, 8, Pp), jnp.float32)),
        compiler_params=cp_par,
    )(x_bf16, w1)
    scale1, shift1 = _bn_affine(s1, ss1, float(R), g1, b1)

    # --- pass 2: bn1 + relu + conv2 (3x3 as 9 shifted-tap matmuls) + bn2 stats ---
    pad = _round_up(W + 1, 8)
    k2 = functools.partial(_bn_relu_conv3x3_kernel, H=H, W=W, pad=pad)
    y2, s2, ss2 = pl.pallas_call(
        k2,
        grid=(N,),
        in_specs=[pl.BlockSpec((HW, Pp), lambda n: (n, 0)),
                  pl.BlockSpec((1, Pp), lambda n: (0, 0)),
                  pl.BlockSpec((1, Pp), lambda n: (0, 0)),
                  pl.BlockSpec((9, Pp, Pp), lambda n: (0, 0, 0))],
        out_specs=(pl.BlockSpec((HW, Pp), lambda n: (n, 0)),
                   pl.BlockSpec((1, 8, Pp), lambda n: (n, 0, 0)),
                   pl.BlockSpec((1, 8, Pp), lambda n: (n, 0, 0))),
        out_shape=(jax.ShapeDtypeStruct((R, Pp), jnp.bfloat16),
                   jax.ShapeDtypeStruct((N, 8, Pp), jnp.float32),
                   jax.ShapeDtypeStruct((N, 8, Pp), jnp.float32)),
        scratch_shapes=[pltpu.VMEM((HW + 2 * pad, Pp), jnp.float32)],
        compiler_params=cp_par,
    )(y1, scale1, shift1, w2)
    scale2, shift2 = _bn_affine(s2, ss2, float(R), g2, b2)

    # --- pass 3: bn2 + relu + conv3 (1x1) + bn3 partial stats ---
    y3, s3, ss3 = pl.pallas_call(
        _bnrelu_conv_kernel,
        grid=(G,),
        in_specs=[pl.BlockSpec((TR, Pp), lambda i: (i, 0)),
                  pl.BlockSpec((1, Pp), lambda i: (0, 0)),
                  pl.BlockSpec((1, Pp), lambda i: (0, 0)),
                  pl.BlockSpec((Pp, Cp), lambda i: (0, 0))],
        out_specs=(pl.BlockSpec((TR, Cp), lambda i: (i, 0)),
                   pl.BlockSpec((1, 8, Cp), lambda i: (i, 0, 0)),
                   pl.BlockSpec((1, 8, Cp), lambda i: (i, 0, 0))),
        out_shape=(jax.ShapeDtypeStruct((R, Cp), jnp.bfloat16),
                   jax.ShapeDtypeStruct((G, 8, Cp), jnp.float32),
                   jax.ShapeDtypeStruct((G, 8, Cp), jnp.float32)),
        compiler_params=cp_par,
    )(y2, scale2, shift2, w3)
    scale3, shift3 = _bn_affine(s3, ss3, float(R), g3, b3)

    # --- pass 4: bn3 + residual add + relu (fully parallel grid) ---
    out_flat = pl.pallas_call(
        _bn_res_relu_kernel,
        grid=(G,),
        in_specs=[pl.BlockSpec((TR, Cp), lambda i: (i, 0)),
                  pl.BlockSpec((TR, Cp), lambda i: (i, 0)),
                  pl.BlockSpec((1, Cp), lambda i: (0, 0)),
                  pl.BlockSpec((1, Cp), lambda i: (0, 0))],
        out_specs=pl.BlockSpec((TR, Cp), lambda i: (i, 0)),
        out_shape=jax.ShapeDtypeStruct((R, Cp), jnp.float32),
        compiler_params=cp_par,
    )(y3, x_flat, scale3, shift3)

    # TODO(synk): when Cout % 128 == 0 (real ResNet widths) emit (R, Cout)
    # directly / return NHWC to avoid this extra HBM slice+transpose pass.
    out = out_flat[:, :Cout].reshape(N, H, W, Cout)
    return jnp.transpose(out, (0, 3, 1, 2))   # back to NCHW


# ---------------------------------------------------------------------------
# Pure-JAX f32 reference (correctness check only)
# ---------------------------------------------------------------------------
def _bn_nhwc(y, g, b):
    mu = jnp.mean(y, axis=(0, 1, 2), keepdims=True)
    var = jnp.mean((y - mu) ** 2, axis=(0, 1, 2), keepdims=True)
    return (y - mu) * lax.rsqrt(var + EPS) * g + b


def reference_forward(x_nchw, params):
    x = jnp.transpose(x_nchw, (0, 2, 3, 1)).astype(jnp.float32)  # NHWC
    dn = ("NHWC", "HWIO", "NHWC")
    w1 = jnp.transpose(params["w1"], (2, 3, 1, 0))
    w2 = jnp.transpose(params["w2"], (2, 3, 1, 0))
    w3 = jnp.transpose(params["w3"], (2, 3, 1, 0))

    y = lax.conv_general_dilated(x, w1, (1, 1), "VALID", dimension_numbers=dn)
    y = jnp.maximum(_bn_nhwc(y, params["g1"], params["b1"]), 0.0)
    y = lax.conv_general_dilated(y, w2, (1, 1), ((1, 1), (1, 1)), dimension_numbers=dn)
    y = jnp.maximum(_bn_nhwc(y, params["g2"], params["b2"]), 0.0)
    y = lax.conv_general_dilated(y, w3, (1, 1), "VALID", dimension_numbers=dn)
    y = _bn_nhwc(y, params["g3"], params["b3"])
    y = jnp.maximum(y + x, 0.0)
    return jnp.transpose(y, (0, 3, 1, 2))


# ---------------------------------------------------------------------------
if __name__ == "__main__":
    N, H, W = 2, 16, 16
    planes = 8
    expansion = 4
    inplanes = planes * expansion   # residual add works with dim_change=None

    key = jax.random.PRNGKey(0)
    ks = jax.random.split(key, 10)
    params = {
        "w1": 0.1 * jax.random.normal(ks[0], (planes, inplanes, 1, 1), jnp.float32),
        "w2": 0.1 * jax.random.normal(ks[1], (planes, planes, 3, 3), jnp.float32),
        "w3": 0.1 * jax.random.normal(ks[2], (planes * expansion, planes, 1, 1), jnp.float32),
        "g1": 1.0 + 0.1 * jax.random.normal(ks[3], (planes,), jnp.float32),
        "b1": 0.1 * jax.random.normal(ks[4], (planes,), jnp.float32),
        "g2": 1.0 + 0.1 * jax.random.normal(ks[5], (planes,), jnp.float32),
        "b2": 0.1 * jax.random.normal(ks[6], (planes,), jnp.float32),
        "g3": 1.0 + 0.1 * jax.random.normal(ks[7], (planes * expansion,), jnp.float32),
        "b3": 0.1 * jax.random.normal(ks[8], (planes * expansion,), jnp.float32),
    }
    x = jax.random.normal(ks[9], (N, inplanes, H, W), jnp.float32)

    out = jax.block_until_ready(bottleneck_forward(x, params))
    ref = reference_forward(x, params)

    assert out.shape == (N, planes * expansion, H, W)
    abs_err = float(jnp.max(jnp.abs(out - ref)))
    ref_scale = float(jnp.max(jnp.abs(ref))) + 1e-6
    # bf16 intermediates + bf16 MXU operands vs f32 reference.
    if abs_err > 1e-1 and abs_err / ref_scale > 3e-2:
        raise RuntimeError(f"mismatch vs reference: abs={abs_err}, rel={abs_err / ref_scale}")
    print("KERNEL_OK")
</pallas_src>

<mosaic_0001>
module attributes {stable_mosaic.version = 11 : i64} {
  func.func @_conv1_kernel(%arg0: i32, %arg1: memref<512x128xbf16, #tpu.memory_space<vmem>>, %arg2: memref<128x128xbf16, #tpu.memory_space<vmem>>, %arg3: memref<512x128xbf16, #tpu.memory_space<vmem>>, %arg4: memref<1x8x128xf32, #tpu.memory_space<vmem>>, %arg5: memref<1x8x128xf32, #tpu.memory_space<vmem>>) attributes {dimension_semantics = [#tpu.dimension_semantics<parallel>], iteration_bounds = array<i64: 1>, scalar_prefetch = 0 : i64, scratch_operands = 0 : i64, tpu.core_type = #tpu.core_type<tc>, window_params = [{transform_indices = @transform_0, window_bounds = array<i64: 512, 128>}, {pipeline_mode = #tpu.pipeline_mode<synchronous>, transform_indices = @transform_1, window_bounds = array<i64: 128, 128>}, {transform_indices = @transform_2, window_bounds = array<i64: 512, 128>}, {transform_indices = @transform_3, window_bounds = array<i64: 1, 8, 128>}, {transform_indices = @transform_4, window_bounds = array<i64: 1, 8, 128>}]} {
    %c0 = arith.constant 0 : index
    %c0_0 = arith.constant 0 : index
    %0 = vector.load %arg1[%c0, %c0_0] : memref<512x128xbf16, #tpu.memory_space<vmem>>, vector<512x128xbf16>
    %c0_1 = arith.constant 0 : index
    %c0_2 = arith.constant 0 : index
    %1 = vector.load %arg2[%c0_1, %c0_2] : memref<128x128xbf16, #tpu.memory_space<vmem>>, vector<128x128xbf16>
    %cst = arith.constant dense<0.000000e+00> : vector<512x128xf32>
    %2 = tpu.matmul %0, %1, %cst {dimension_numbers = #tpu.dot_dimension_numbers<[1], [0], [0], [1], [0, 0, 1, 1], [], []>} : vector<512x128xbf16>, vector<128x128xbf16>, vector<512x128xf32> -> vector<512x128xf32>
    %3 = arith.truncf %2 : vector<512x128xf32> to vector<512x128xbf16>
    %c0_3 = arith.constant 0 : index
    %c0_4 = arith.constant 0 : index
    %4 = vector.load %arg3[%c0_3, %c0_4] : memref<512x128xbf16, #tpu.memory_space<vmem>>, vector<512x128xbf16>
    tpu.vector_store %arg3[%c0_3, %c0_4], %3 {strides = array<i32>} : memref<512x128xbf16, #tpu.memory_space<vmem>>, vector<512x128xbf16>,
    %cst_5 = arith.constant dense<0.000000e+00> : vector<128xf32>
    %5 = vector.multi_reduction <add>, %2, %cst_5 [0] : vector<512x128xf32> to vector<128xf32>
    %6 = vector.shape_cast %5 : vector<128xf32> to vector<1x128xf32>
    %7 = arith.mulf %2, %2 : vector<512x128xf32>
    %cst_6 = arith.constant dense<0.000000e+00> : vector<128xf32>
    %8 = vector.multi_reduction <add>, %7, %cst_6 [0] : vector<512x128xf32> to vector<128xf32>
    %9 = vector.shape_cast %8 : vector<128xf32> to vector<1x128xf32>
    %10 = vector.shape_cast %6 : vector<1x128xf32> to vector<1x1x128xf32>
    %11 = vector.shape_cast %10 : vector<1x1x128xf32> to vector<1x1x128xf32>
    %12 = vector.broadcast %11 : vector<1x1x128xf32> to vector<1x8x128xf32>
    %c0_7 = arith.constant 0 : index
    %c0_8 = arith.constant 0 : index
    %c0_9 = arith.constant 0 : index
    %13 = vector.load %arg4[%c0_7, %c0_8, %c0_9] : memref<1x8x128xf32, #tpu.memory_space<vmem>>, vector<1x8x128xf32>
    tpu.vector_store %arg4[%c0_7, %c0_8, %c0_9], %12 {strides = array<i32>} : memref<1x8x128xf32, #tpu.memory_space<vmem>>, vector<1x8x128xf32>,
    %14 = vector.shape_cast %9 : vector<1x128xf32> to vector<1x1x128xf32>
    %15 = vector.shape_cast %14 : vector<1x1x128xf32> to vector<1x1x128xf32>
    %16 = vector.broadcast %15 : vector<1x1x128xf32> to vector<1x8x128xf32>
    %c0_10 = arith.constant 0 : index
    %c0_11 = arith.constant 0 : index
    %c0_12 = arith.constant 0 : index
    %17 = vector.load %arg5[%c0_10, %c0_11, %c0_12] : memref<1x8x128xf32, #tpu.memory_space<vmem>>, vector<1x8x128xf32>
    tpu.vector_store %arg5[%c0_10, %c0_11, %c0_12], %16 {strides = array<i32>} : memref<1x8x128xf32, #tpu.memory_space<vmem>>, vector<1x8x128xf32>,
    return
  }
  func.func @transform_0(%arg0: i32) -> (i32, i32) {
    %c0_i32 = arith.constant 0 : i32
    %c0_i32_0 = arith.constant 0 : i32
    return %arg0, %c0_i32 : i32, i32
  }
  func.func @transform_1(%arg0: i32) -> (i32, i32) {
    %c0_i32 = arith.constant 0 : i32
    %c0_i32_0 = arith.constant 0 : i32
    %c0_i32_1 = arith.constant 0 : i32
    return %c0_i32, %c0_i32_0 : i32, i32
  }
  func.func @transform_2(%arg0: i32) -> (i32, i32) {
    %c0_i32 = arith.constant 0 : i32
    %c0_i32_0 = arith.constant 0 : i32
    return %arg0, %c0_i32 : i32, i32
  }
  func.func @transform_3(%arg0: i32) -> (i32, i32, i32) {
    %c0_i32 = arith.constant 0 : i32
    %c0_i32_0 = arith.constant 0 : i32
    %c0_i32_1 = arith.constant 0 : i32
    return %arg0, %c0_i32, %c0_i32_0 : i32, i32, i32
  }
  func.func @transform_4(%arg0: i32) -> (i32, i32, i32) {
    %c0_i32 = arith.constant 0 : i32
    %c0_i32_0 = arith.constant 0 : i32
    %c0_i32_1 = arith.constant 0 : i32
    return %arg0, %c0_i32, %c0_i32_0 : i32, i32, i32
  }
}

</mosaic_0001>

<llo_original>
// kernel: tpu_custom_call.1
$region0: #{tpu_custom_call.1}
  #allocation0 [shape = 'u32[]', space=smem, size = 0x4, offset = 0x4, fixed_abs, tag = 'smem constant byte address 0x4 - core index']
  #allocation1 [shape = 'u32[72,128]{1,0:T(1,128)}', space=vmem, size = 0x9000, scoped, tag = 'internal scratch']
  %s0 = inlined_call_operand.hbm [shape: bf16[512,128], index: 0, kind: input, shape index: {}]
  %s1 = inlined_call_operand.hbm [shape: bf16[128,128], index: 1, kind: input, shape index: {}]
  %s2 = inlined_call_operand.hbm [shape: bf16[512,128], index: 2, kind: output, shape index: {0}]
  %s3 = inlined_call_operand.hbm [shape: f32[1,8,128], index: 3, kind: output, shape index: {1}]
  %s4 = inlined_call_operand.hbm [shape: f32[1,8,128], index: 4, kind: output, shape index: {2}]
  %5 = xla_tuple %s2, %s3, %s4
  %s6 = sld [smem:[#allocation0]]
  $region42: #{tpu_custom_call.1} parent=0
    _
  %s8 = ssub.s32 1, %s6
  %s9 = scalar_select 0, %s8, %s6
  $region1: #{tpu_custom_call.1} parent=0
    #allocation2 [shape = 'u8[131072]{0}', space=vmem, size = 0x20000, scoped, tag = 'input window, operand 0, single buffered']
    #allocation3 [shape = 's32[1]{0}', space=sflag, size = 0x4, scoped, tag = 'scoped memory for tpu_custom_call.1']
    #allocation4 [shape = 's32[1]{0}', space=sflag, size = 0x4, scoped, tag = 'scoped memory for tpu_custom_call.1']
    #allocation5 [shape = 'u8[32768]{0}', space=vmem, size = 0x8000, scoped, tag = 'input window, operand 1, single buffered']
    #allocation6 [shape = 's32[1]{0}', space=sflag, size = 0x4, scoped, tag = 'scoped memory for tpu_custom_call.1']
    #allocation7 [shape = 'u8[131072]{0}', space=vmem, size = 0x20000, scoped, tag = 'output window, operand 0, single buffered']
    #allocation8 [shape = 'u8[4096]{0}', space=vmem, size = 0x1000, scoped, tag = 'output window, operand 1, single buffered']
    #allocation9 [shape = 's32[1]{0}', space=sflag, size = 0x4, scoped, tag = 'scoped memory for tpu_custom_call.1']
    #allocation10 [shape = 'u8[4096]{0}', space=vmem, size = 0x1000, scoped, tag = 'output window, operand 2, single buffered']
    %10 = vsyncpa [#allocation3], 0
    %11 = vsyncpa [#allocation6], 0
    %12 = vsyncpa [#allocation4], 0
    %13 = vsyncpa [#allocation9], 0
    // Predicated region
    $region2: #{tpu_custom_call.1} parent=1 // pred_check
      _
    $region3: #{tpu_custom_call.1} parent=1 // pred_check_branch
      %15 = sbr.rel (0) target = $region5
    $region4: #{tpu_custom_call.1} parent=1 // pred_region
      %17 = vsyncadd [#allocation3], 0
      %s18 = sshll.u32 %s0, 4
      %s19 = int_to_ptr.hbm [resolvable:$true] %s18
      %s20 = sshll.u32 [#allocation2], 4
      %s21 = int_to_ptr.vmem [resolvable:$true] %s20
      %26 = dma.hbm_to_vmem [thread:$0]  %s19, 4096, %s21, [#allocation3], 64, 64, 4
    $region5: #{tpu_custom_call.1} parent=1 // pred_fallthru
      _
    // Predicated region
    $region6: #{tpu_custom_call.1} parent=1 // pred_check
      _
    $region7: #{tpu_custom_call.1} parent=1 // pred_check_branch
      %28 = sbr.rel (0) target = $region9
    $region8: #{tpu_custom_call.1} parent=1 // pred_region
      %30 = vsyncadd [#allocation6], 0
      %s31 = sshll.u32 %s1, 4
      %s32 = int_to_ptr.hbm [resolvable:$true] %s31
      %s33 = sshll.u32 [#allocation5], 4
      %s34 = int_to_ptr.vmem [resolvable:$true] %s33
      %39 = dma.hbm_to_vmem [thread:$0]  %s32, 1024, %s34, [#allocation6], 64, 64, 4
    $region9: #{tpu_custom_call.1} parent=1 // pred_fallthru
      _
    // Predicated region
    $region10: #{tpu_custom_call.1} parent=1 // pred_check
      _
    $region11: #{tpu_custom_call.1} parent=1 // pred_check_branch
      %41 = sbr.rel (0) target = $region13
    $region12: #{tpu_custom_call.1} parent=1 // pred_region
      %43 = dma.done [#allocation3], 4096
    $region13: #{tpu_custom_call.1} parent=1 // pred_fallthru
      _
    // Predicated region
    $region14: #{tpu_custom_call.1} parent=1 // pred_check
      _
    $region15: #{tpu_custom_call.1} parent=1 // pred_check_branch
      %45 = sbr.rel (0) target = $region17
    $region16: #{tpu_custom_call.1} parent=1 // pred_region
      %47 = dma.done [#allocation6], 1024
    $region17: #{tpu_custom_call.1} parent=1 // pred_fallthru
      _
    %v48 = vld [vmem:[#allocation2] sm:$0xf]
    %v49 = vld [vmem:[#allocation2 + $0x4] sm:$0xf]
    %v50 = vld [vmem:[#allocation2 + $0x8] sm:$0xf]
    %v51 = vld [vmem:[#allocation2 + $0xc] sm:$0xf]
    %v52 = vld [vmem:[#allocation2 + $0x10] sm:$0xf]
    %v53 = vld [vmem:[#allocation2 + $0x14] sm:$0xf]
    %v54 = vld [vmem:[#allocation2 + $0x18] sm:$0xf]
    %v55 = vld [vmem:[#allocation2 + $0x1c] sm:$0xf]
    %v56 = vld [vmem:[#allocation2 + $0x20] sm:$0xf]
    %v57 = vld [vmem:[#allocation2 + $0x24] sm:$0xf]
    %v58 = vld [vmem:[#allocation2 + $0x28] sm:$0xf]
    %v59 = vld [vmem:[#allocation2 + $0x2c] sm:$0xf]
    %v60 = vld [vmem:[#allocation2 + $0x30] sm:$0xf]
    %v61 = vld [vmem:[#allocation2 + $0x34] sm:$0xf]
    %v62 = vld [vmem:[#allocation2 + $0x38] sm:$0xf]
    %v63 = vld [vmem:[#allocation2 + $0x3c] sm:$0xf]
    %v64 = vld [vmem:[#allocation2 + $0x40] sm:$0xf]
    %v65 = vld [vmem:[#allocation2 + $0x44] sm:$0xf]
    %v66 = vld [vmem:[#allocation2 + $0x48] sm:$0xf]
    %v67 = vld [vmem:[#allocation2 + $0x4c] sm:$0xf]
    %v68 = vld [vmem:[#allocation2 + $0x50] sm:$0xf]
    %v69 = vld [vmem:[#allocation2 + $0x54] sm:$0xf]
    %v70 = vld [vmem:[#allocation2 + $0x58] sm:$0xf]
    %v71 = vld [vmem:[#allocation2 + $0x5c] sm:$0xf]
    %v72 = vld [vmem:[#allocation2 + $0x60] sm:$0xf]
    %v73 = vld [vmem:[#allocation2 + $0x64] sm:$0xf]
    %v74 = vld [vmem:[#allocation2 + $0x68] sm:$0xf]
    %v75 = vld [vmem:[#allocation2 + $0x6c] sm:$0xf]
    %v76 = vld [vmem:[#allocation2 + $0x70] sm:$0xf]
    %v77 = vld [vmem:[#allocation2 + $0x74] sm:$0xf]
    %v78 = vld [vmem:[#allocation2 + $0x78] sm:$0xf]
    %v79 = vld [vmem:[#allocation2 + $0x7c] sm:$0xf]
    %v80 = vld [vmem:[#allocation2 + $0x80] sm:$0xf]
    %v81 = vld [vmem:[#allocation2 + $0x84] sm:$0xf]
    %v82 = vld [vmem:[#allocation2 + $0x88] sm:$0xf]
    %v83 = vld [vmem:[#allocation2 + $0x8c] sm:$0xf]
    %v84 = vld [vmem:[#allocation2 + $0x90] sm:$0xf]
    %v85 = vld [vmem:[#allocation2 + $0x94] sm:$0xf]
    %v86 = vld [vmem:[#allocation2 + $0x98] sm:$0xf]
    %v87 = vld [vmem:[#allocation2 + $0x9c] sm:$0xf]
    %v88 = vld [vmem:[#allocation2 + $0xa0] sm:$0xf]
    %v89 = vld [vmem:[#allocation2 + $0xa4] sm:$0xf]
    %v90 = vld [vmem:[#allocation2 + $0xa8] sm:$0xf]
    %v91 = vld [vmem:[#allocation2 + $0xac] sm:$0xf]
    %v92 = vld [vmem:[#allocation2 + $0xb0] sm:$0xf]
    %v93 = vld [vmem:[#allocation2 + $0xb4] sm:$0xf]
    %v94 = vld [vmem:[#allocation2 + $0xb8] sm:$0xf]
    %v95 = vld [vmem:[#allocation2 + $0xbc] sm:$0xf]
    %v96 = vld [vmem:[#allocation2 + $0xc0] sm:$0xf]
    %v97 = vld [vmem:[#allocation2 + $0xc4] sm:$0xf]
    %v98 = vld [vmem:[#allocation2 + $0xc8] sm:$0xf]
    %v99 = vld [vmem:[#allocation2 + $0xcc] sm:$0xf]
    %v100 = vld [vmem:[#allocation2 + $0xd0] sm:$0xf]
    %v101 = vld [vmem:[#allocation2 + $0xd4] sm:$0xf]
    %v102 = vld [vmem:[#allocation2 + $0xd8] sm:$0xf]
    %v103 = vld [vmem:[#allocation2 + $0xdc] sm:$0xf]
    %v104 = vld [vmem:[#allocation2 + $0xe0] sm:$0xf]
    %v105 = vld [vmem:[#allocation2 + $0xe4] sm:$0xf]
    %v106 = vld [vmem:[#allocation2 + $0xe8] sm:$0xf]
    %v107 = vld [vmem:[#allocation2 + $0xec] sm:$0xf]
    %v108 = vld [vmem:[#allocation2 + $0xf0] sm:$0xf]
    %v109 = vld [vmem:[#allocation2 + $0xf4] sm:$0xf]
    %v110 = vld [vmem:[#allocation2 + $0xf8] sm:$0xf]
    %v111 = vld [vmem:[#allocation2 + $0xfc] sm:$0xf]
    %v112 = vld [vmem:[#allocation5] sm:$0xf]
    %v113 = vld [vmem:[#allocation5 + $0x4] sm:$0xf]
    %v114 = vld [vmem:[#allocation5 + $0x8] sm:$0xf]
    %v115 = vld [vmem:[#allocation5 + $0xc] sm:$0xf]
    %v116 = vld [vmem:[#allocation5 + $0x10] sm:$0xf]
    %v117 = vld [vmem:[#allocation5 + $0x14] sm:$0xf]
    %v118 = vld [vmem:[#allocation5 + $0x18] sm:$0xf]
    %v119 = vld [vmem:[#allocation5 + $0x1c] sm:$0xf]
    %v120 = vld [vmem:[#allocation5 + $0x20] sm:$0xf]
    %v121 = vld [vmem:[#allocation5 + $0x24] sm:$0xf]
    %v122 = vld [vmem:[#allocation5 + $0x28] sm:$0xf]
    %v123 = vld [vmem:[#allocation5 + $0x2c] sm:$0xf]
    %v124 = vld [vmem:[#allocation5 + $0x30] sm:$0xf]
    %v125 = vld [vmem:[#allocation5 + $0x34] sm:$0xf]
    %v126 = vld [vmem:[#allocation5 + $0x38] sm:$0xf]
    %v127 = vld [vmem:[#allocation5 + $0x3c] sm:$0xf]
    %v192 = vunpack.c.l.b16 %v48
    %v193 = vunpack.c.l.b16 %v49
    %v194 = vunpack.c.l.b16 %v50
    %v195 = vunpack.c.l.b16 %v51
    %v196 = vunpack.c.l.b16 %v52
    %v197 = vunpack.c.l.b16 %v53
    %v198 = vunpack.c.l.b16 %v54
    %v199 = vunpack.c.l.b16 %v55
    %v200 = vunpack.c.l.b16 %v56
    %v201 = vunpack.c.l.b16 %v57
    %v202 = vunpack.c.l.b16 %v58
    %v203 = vunpack.c.l.b16 %v59
    %v204 = vunpack.c.l.b16 %v60
    %v205 = vunpack.c.l.b16 %v61
    %v206 = vunpack.c.l.b16 %v62
    %v207 = vunpack.c.l.b16 %v63
    %v208 = vunpack.c.l.b16 %v64
    %v209 = vunpack.c.l.b16 %v65
    %v210 = vunpack.c.l.b16 %v66
    %v211 = vunpack.c.l.b16 %v67
    %v212 = vunpack.c.l.b16 %v68
    %v213 = vunpack.c.l.b16 %v69
    %v214 = vunpack.c.l.b16 %v70
    %v215 = vunpack.c.l.b16 %v71
    %v216 = vunpack.c.l.b16 %v72
    %v217 = vunpack.c.l.b16 %v73
    %v218 = vunpack.c.l.b16 %v74
    %v219 = vunpack.c.l.b16 %v75
    %v220 = vunpack.c.l.b16 %v76
    %v221 = vunpack.c.l.b16 %v77
    %v222 = vunpack.c.l.b16 %v78
    %v223 = vunpack.c.l.b16 %v79
    %v224 = vunpack.c.l.b16 %v80
    %v225 = vunpack.c.l.b16 %v81
    %v226 = vunpack.c.l.b16 %v82
    %v227 = vunpack.c.l.b16 %v83
    %v228 = vunpack.c.l.b16 %v84
    %v229 = vunpack.c.l.b16 %v85
    %v230 = vunpack.c.l.b16 %v86
    %v231 = vunpack.c.l.b16 %v87
    %v232 = vunpack.c.l.b16 %v88
    %v233 = vunpack.c.l.b16 %v89
    %v234 = vunpack.c.l.b16 %v90
    %v235 = vunpack.c.l.b16 %v91
    %v236 = vunpack.c.l.b16 %v92
    %v237 = vunpack.c.l.b16 %v93
    %v238 = vunpack.c.l.b16 %v94
    %v239 = vunpack.c.l.b16 %v95
    %v240 = vunpack.c.l.b16 %v96
    %v241 = vunpack.c.l.b16 %v97
    %v242 = vunpack.c.l.b16 %v98
    %v243 = vunpack.c.l.b16 %v99
    %v244 = vunpack.c.l.b16 %v100
    %v245 = vunpack.c.l.b16 %v101
    %v246 = vunpack.c.l.b16 %v102
    %v247 = vunpack.c.l.b16 %v103
    %v248 = vunpack.c.l.b16 %v104
    %v249 = vunpack.c.l.b16 %v105
    %v250 = vunpack.c.l.b16 %v106
    %v251 = vunpack.c.l.b16 %v107
    %v252 = vunpack.c.l.b16 %v108
    %v253 = vunpack.c.l.b16 %v109
    %v254 = vunpack.c.l.b16 %v110
    %v255 = vunpack.c.l.b16 %v111
    %v256 = vpack.c.b16 %v193, %v192
    %v257 = vpack.c.b16 %v195, %v194
    %v258 = vpack.c.b16 %v197, %v196
    %v259 = vpack.c.b16 %v199, %v198
    %v260 = vpack.c.b16 %v201, %v200
    %v261 = vpack.c.b16 %v203, %v202
    %v262 = vpack.c.b16 %v205, %v204
    %v263 = vpack.c.b16 %v207, %v206
    %v264 = vpack.c.b16 %v209, %v208
    %v265 = vpack.c.b16 %v211, %v210
    %v266 = vpack.c.b16 %v213, %v212
    %v267 = vpack.c.b16 %v215, %v214
    %v268 = vpack.c.b16 %v217, %v216
    %v269 = vpack.c.b16 %v219, %v218
    %v270 = vpack.c.b16 %v221, %v220
    %v271 = vpack.c.b16 %v223, %v222
    %v272 = vpack.c.b16 %v225, %v224
    %v273 = vpack.c.b16 %v227, %v226
    %v274 = vpack.c.b16 %v229, %v228
    %v275 = vpack.c.b16 %v231, %v230
    %v276 = vpack.c.b16 %v233, %v232
    %v277 = vpack.c.b16 %v235, %v234
    %v278 = vpack.c.b16 %v237, %v236
    %v279 = vpack.c.b16 %v239, %v238
    %v280 = vpack.c.b16 %v241, %v240
    %v281 = vpack.c.b16 %v243, %v242
    %v282 = vpack.c.b16 %v245, %v244
    %v283 = vpack.c.b16 %v247, %v246
    %v284 = vpack.c.b16 %v249, %v248
    %v285 = vpack.c.b16 %v251, %v250
    %v286 = vpack.c.b16 %v253, %v252
    %v287 = vpack.c.b16 %v255, %v254
    %v336 = vunpack.c.l.b16 %v112
    %v337 = vunpack.c.l.b16 %v113
    %v338 = vunpack.c.l.b16 %v114
    %v339 = vunpack.c.l.b16 %v115
    %v340 = vunpack.c.l.b16 %v116
    %v341 = vunpack.c.l.b16 %v117
    %v342 = vunpack.c.l.b16 %v118
    %v343 = vunpack.c.l.b16 %v119
    %v344 = vunpack.c.l.b16 %v120
    %v345 = vunpack.c.l.b16 %v121
    %v346 = vunpack.c.l.b16 %v122
    %v347 = vunpack.c.l.b16 %v123
    %v348 = vunpack.c.l.b16 %v124
    %v349 = vunpack.c.l.b16 %v125
    %v350 = vunpack.c.l.b16 %v126
    %v351 = vunpack.c.l.b16 %v127
    %v352 = vpack.c.b16 %v337, %v336
    %v353 = vpack.c.b16 %v339, %v338
    %v354 = vpack.c.b16 %v341, %v340
    %v355 = vpack.c.b16 %v343, %v342
    %v356 = vpack.c.b16 %v345, %v344
    %v357 = vpack.c.b16 %v347, %v346
    %v358 = vpack.c.b16 %v349, %v348
    %v359 = vpack.c.b16 %v351, %v350
    %368 = vmatpush.bf16.msra.mxu0 %v359
    %369 = vmatpush.bf16.msra.mxu0 %v358
    %370 = vmatpush.bf16.msra.mxu0 %v357
    %371 = vmatpush.bf16.msra.mxu0 %v356
    %372 = vmatpush.bf16.msra.mxu0 %v355
    %373 = vmatpush.bf16.msra.mxu0 %v354
    %374 = vmatpush.bf16.msra.mxu0 %v353
    %375 = vmatpush.bf16.msra.mxu0 %v352
    %376 = vmatmul.bf16.gmra.mxu0 %v256
    %v377 = vpop.f32.mrf.mxu0
    %v378 = vadd.f32 0.0, %v377
    %v379 = vpop.f32.mrf.mxu0
    %v380 = vadd.f32 0.0, %v379
    %381 = vmatmul.bf16.gmra.mxu0 %v257
    %v382 = vpop.f32.mrf.mxu0
    %v383 = vadd.f32 0.0, %v382
    %v384 = vpop.f32.mrf.mxu0
    %v385 = vadd.f32 0.0, %v384
    %386 = vmatmul.bf16.gmra.mxu0 %v258
    %v387 = vpop.f32.mrf.mxu0
    %v388 = vadd.f32 0.0, %v387
    %v389 = vpop.f32.mrf.mxu0
    %v390 = vadd.f32 0.0, %v389
    %391 = vmatmul.bf16.gmra.mxu0 %v259
    %v392 = vpop.f32.mrf.mxu0
    %v393 = vadd.f32 0.0, %v392
    %v394 = vpop.f32.mrf.mxu0
    %v395 = vadd.f32 0.0, %v394
    %396 = vmatmul.bf16.gmra.mxu0 %v260
    %v397 = vpop.f32.mrf.mxu0
    %v398 = vadd.f32 0.0, %v397
    %v399 = vpop.f32.mrf.mxu0
    %v400 = vadd.f32 0.0, %v399
    %401 = vmatmul.bf16.gmra.mxu0 %v261
    %v402 = vpop.f32.mrf.mxu0
    %v403 = vadd.f32 0.0, %v402
    %v404 = vpop.f32.mrf.mxu0
    %v405 = vadd.f32 0.0, %v404
    %406 = vmatmul.bf16.gmra.mxu0 %v262
    %v407 = vpop.f32.mrf.mxu0
    %v408 = vadd.f32 0.0, %v407
    %v409 = vpop.f32.mrf.mxu0
    %v410 = vadd.f32 0.0, %v409
    %411 = vmatmul.bf16.gmra.mxu0 %v263
    %v412 = vpop.f32.mrf.mxu0
    %v413 = vadd.f32 0.0, %v412
    %v414 = vpop.f32.mrf.mxu0
    %v415 = vadd.f32 0.0, %v414
    %416 = vmatmul.bf16.gmra.mxu0 %v264
    %v417 = vpop.f32.mrf.mxu0
    %v418 = vadd.f32 0.0, %v417
    %v419 = vpop.f32.mrf.mxu0
    %v420 = vadd.f32 0.0, %v419
    %421 = vmatmul.bf16.gmra.mxu0 %v265
    %v422 = vpop.f32.mrf.mxu0
    %v423 = vadd.f32 0.0, %v422
    %v424 = vpop.f32.mrf.mxu0
    %v425 = vadd.f32 0.0, %v424
    %426 = vmatmul.bf16.gmra.mxu0 %v266
    %v427 = vpop.f32.mrf.mxu0
    %v428 = vadd.f32 0.0, %v427
    %v429 = vpop.f32.mrf.mxu0
    %v430 = vadd.f32 0.0, %v429
    %431 = vmatmul.bf16.gmra.mxu0 %v267
    %v432 = vpop.f32.mrf.mxu0
    %v433 = vadd.f32 0.0, %v432
    %v434 = vpop.f32.mrf.mxu0
    %v435 = vadd.f32 0.0, %v434
    %436 = vmatmul.bf16.gmra.mxu0 %v268
    %v437 = vpop.f32.mrf.mxu0
    %v438 = vadd.f32 0.0, %v437
    %v439 = vpop.f32.mrf.mxu0
    %v440 = vadd.f32 0.0, %v439
    %441 = vmatmul.bf16.gmra.mxu0 %v269
    %v442 = vpop.f32.mrf.mxu0
    %v443 = vadd.f32 0.0, %v442
    %v444 = vpop.f32.mrf.mxu0
    %v445 = vadd.f32 0.0, %v444
    %446 = vmatmul.bf16.gmra.mxu0 %v270
    %v447 = vpop.f32.mrf.mxu0
    %v448 = vadd.f32 0.0, %v447
    %v449 = vpop.f32.mrf.mxu0
    %v450 = vadd.f32 0.0, %v449
    %451 = vmatmul.bf16.gmra.mxu0 %v271
    %v452 = vpop.f32.mrf.mxu0
    %v453 = vadd.f32 0.0, %v452
    %v454 = vpop.f32.mrf.mxu0
    %v455 = vadd.f32 0.0, %v454
    %456 = vmatmul.bf16.gmra.mxu0 %v272
    %v457 = vpop.f32.mrf.mxu0
    %v458 = vadd.f32 0.0, %v457
    %v459 = vpop.f32.mrf.mxu0
    %v460 = vadd.f32 0.0, %v459
    %461 = vmatmul.bf16.gmra.mxu0 %v273
    %v462 = vpop.f32.mrf.mxu0
    %v463 = vadd.f32 0.0, %v462
    %v464 = vpop.f32.mrf.mxu0
    %v465 = vadd.f32 0.0, %v464
    %466 = vmatmul.bf16.gmra.mxu0 %v274
    %v467 = vpop.f32.mrf.mxu0
    %v468 = vadd.f32 0.0, %v467
    %v469 = vpop.f32.mrf.mxu0
    %v470 = vadd.f32 0.0, %v469
    %471 = vmatmul.bf16.gmra.mxu0 %v275
    %v472 = vpop.f32.mrf.mxu0
    %v473 = vadd.f32 0.0, %v472
    %v474 = vpop.f32.mrf.mxu0
    %v475 = vadd.f32 0.0, %v474
    %476 = vmatmul.bf16.gmra.mxu0 %v276
    %v477 = vpop.f32.mrf.mxu0
    %v478 = vadd.f32 0.0, %v477
    %v479 = vpop.f32.mrf.mxu0
    %v480 = vadd.f32 0.0, %v479
    %481 = vmatmul.bf16.gmra.mxu0 %v277
    %v482 = vpop.f32.mrf.mxu0
    %v483 = vadd.f32 0.0, %v482
    %v484 = vpop.f32.mrf.mxu0
    %v485 = vadd.f32 0.0, %v484
    %486 = vmatmul.bf16.gmra.mxu0 %v278
    %v487 = vpop.f32.mrf.mxu0
    %v488 = vadd.f32 0.0, %v487
    %v489 = vpop.f32.mrf.mxu0
    %v490 = vadd.f32 0.0, %v489
    %491 = vmatmul.bf16.gmra.mxu0 %v279
    %v492 = vpop.f32.mrf.mxu0
    %v493 = vadd.f32 0.0, %v492
    %v494 = vpop.f32.mrf.mxu0
    %v495 = vadd.f32 0.0, %v494
    %496 = vmatmul.bf16.gmra.mxu0 %v280
    %v497 = vpop.f32.mrf.mxu0
    %v498 = vadd.f32 0.0, %v497
    %v499 = vpop.f32.mrf.mxu0
    %v500 = vadd.f32 0.0, %v499
    %501 = vmatmul.bf16.gmra.mxu0 %v281
    %v502 = vpop.f32.mrf.mxu0
    %v503 = vadd.f32 0.0, %v502
    %v504 = vpop.f32.mrf.mxu0
    %v505 = vadd.f32 0.0, %v504
    %506 = vmatmul.bf16.gmra.mxu0 %v282
    %v507 = vpop.f32.mrf.mxu0
    %v508 = vadd.f32 0.0, %v507
    %v509 = vpop.f32.mrf.mxu0
    %v510 = vadd.f32 0.0, %v509
    %511 = vmatmul.bf16.gmra.mxu0 %v283
    %v512 = vpop.f32.mrf.mxu0
    %v513 = vadd.f32 0.0, %v512
    %v514 = vpop.f32.mrf.mxu0
    %v515 = vadd.f32 0.0, %v514
    %516 = vmatmul.bf16.gmra.mxu0 %v284
    %v517 = vpop.f32.mrf.mxu0
    %v518 = vadd.f32 0.0, %v517
    %v519 = vpop.f32.mrf.mxu0
    %v520 = vadd.f32 0.0, %v519
    %521 = vmatmul.bf16.gmra.mxu0 %v285
    %v522 = vpop.f32.mrf.mxu0
    %v523 = vadd.f32 0.0, %v522
    %v524 = vpop.f32.mrf.mxu0
    %v525 = vadd.f32 0.0, %v524
    %526 = vmatmul.bf16.gmra.mxu0 %v286
    %v527 = vpop.f32.mrf.mxu0
    %v528 = vadd.f32 0.0, %v527
    %v529 = vpop.f32.mrf.mxu0
    %v530 = vadd.f32 0.0, %v529
    %531 = vmatmul.bf16.gmra.mxu0 %v287
    %v532 = vpop.f32.mrf.mxu0
    %v533 = vadd.f32 0.0, %v532
    %v534 = vpop.f32.mrf.mxu0
    %v535 = vadd.f32 0.0, %v534
    %536 = vdwg.mxu0
    %v537 = vpack.c.bf16 %v378, %v378
    %v538 = vpack.c.bf16 %v380, %v380
    %v539 = vpack.c.bf16 %v383, %v383
    %v540 = vpack.c.bf16 %v385, %v385
    %v541 = vpack.c.bf16 %v388, %v388
    %v542 = vpack.c.bf16 %v390, %v390
    %v543 = vpack.c.bf16 %v393, %v393
    %v544 = vpack.c.bf16 %v395, %v395
    %v545 = vpack.c.bf16 %v398, %v398
    %v546 = vpack.c.bf16 %v400, %v400
    %v547 = vpack.c.bf16 %v403, %v403
    %v548 = vpack.c.bf16 %v405, %v405
    %v549 = vpack.c.bf16 %v408, %v408
    %v550 = vpack.c.bf16 %v410, %v410
    %v551 = vpack.c.bf16 %v413, %v413
    %v552 = vpack.c.bf16 %v415, %v415
    %v553 = vpack.c.bf16 %v418, %v418
    %v554 = vpack.c.bf16 %v420, %v420
    %v555 = vpack.c.bf16 %v423, %v423
    %v556 = vpack.c.bf16 %v425, %v425
    %v557 = vpack.c.bf16 %v428, %v428
    %v558 = vpack.c.bf16 %v430, %v430
    %v559 = vpack.c.bf16 %v433, %v433
    %v560 = vpack.c.bf16 %v435, %v435
    %v561 = vpack.c.bf16 %v438, %v438
    %v562 = vpack.c.bf16 %v440, %v440
    %v563 = vpack.c.bf16 %v443, %v443
    %v564 = vpack.c.bf16 %v445, %v445
    %v565 = vpack.c.bf16 %v448, %v448
    %v566 = vpack.c.bf16 %v450, %v450
    %v567 = vpack.c.bf16 %v453, %v453
    %v568 = vpack.c.bf16 %v455, %v455
    %v569 = vpack.c.bf16 %v458, %v458
    %v570 = vpack.c.bf16 %v460, %v460
    %v571 = vpack.c.bf16 %v463, %v463
    %v572 = vpack.c.bf16 %v465, %v465
    %v573 = vpack.c.bf16 %v468, %v468
    %v574 = vpack.c.bf16 %v470, %v470
    %v575 = vpack.c.bf16 %v473, %v473
    %v576 = vpack.c.bf16 %v475, %v475
    %v577 = vpack.c.bf16 %v478, %v478
    %v578 = vpack.c.bf16 %v480, %v480
    %v579 = vpack.c.bf16 %v483, %v483
    %v580 = vpack.c.bf16 %v485, %v485
    %v581 = vpack.c.bf16 %v488, %v488
    %v582 = vpack.c.bf16 %v490, %v490
    %v583 = vpack.c.bf16 %v493, %v493
    %v584 = vpack.c.bf16 %v495, %v495
    %v585 = vpack.c.bf16 %v498, %v498
    %v586 = vpack.c.bf16 %v500, %v500
    %v587 = vpack.c.bf16 %v503, %v503
    %v588 = vpack.c.bf16 %v505, %v505
    %v589 = vpack.c.bf16 %v508, %v508
    %v590 = vpack.c.bf16 %v510, %v510
    %v591 = vpack.c.bf16 %v513, %v513
    %v592 = vpack.c.bf16 %v515, %v515
    %v593 = vpack.c.bf16 %v518, %v518
    %v594 = vpack.c.bf16 %v520, %v520
    %v595 = vpack.c.bf16 %v523, %v523
    %v596 = vpack.c.bf16 %v525, %v525
    %v597 = vpack.c.bf16 %v528, %v528
    %v598 = vpack.c.bf16 %v530, %v530
    %v599 = vpack.c.bf16 %v533, %v533
    %v600 = vpack.c.bf16 %v535, %v535
    %601 = vst [vmem:[#allocation7] sm:$0xf] %v537
    %602 = vst [vmem:[#allocation7 + $0x4] sm:$0xf] %v538
    %603 = vst [vmem:[#allocation7 + $0x8] sm:$0xf] %v539
    %604 = vst [vmem:[#allocation7 + $0xc] sm:$0xf] %v540
    %605 = vst [vmem:[#allocation7 + $0x10] sm:$0xf] %v541
    %606 = vst [vmem:[#allocation7 + $0x14] sm:$0xf] %v542
    %607 = vst [vmem:[#allocation7 + $0x18] sm:$0xf] %v543
    %608 = vst [vmem:[#allocation7 + $0x1c] sm:$0xf] %v544
    %609 = vst [vmem:[#allocation7 + $0x20] sm:$0xf] %v545
    %610 = vst [vmem:[#allocation7 + $0x24] sm:$0xf] %v546
    %611 = vst [vmem:[#allocation7 + $0x28] sm:$0xf] %v547
    %612 = vst [vmem:[#allocation7 + $0x2c] sm:$0xf] %v548
    %613 = vst [vmem:[#allocation7 + $0x30] sm:$0xf] %v549
    %614 = vst [vmem:[#allocation7 + $0x34] sm:$0xf] %v550
    %615 = vst [vmem:[#allocation7 + $0x38] sm:$0xf] %v551
    %616 = vst [vmem:[#allocation7 + $0x3c] sm:$0xf] %v552
    %617 = vst [vmem:[#allocation7 + $0x40] sm:$0xf] %v553
    %618 = vst [vmem:[#allocation7 + $0x44] sm:$0xf] %v554
    %619 = vst [vmem:[#allocation7 + $0x48] sm:$0xf] %v555
    %620 = vst [vmem:[#allocation7 + $0x4c] sm:$0xf] %v556
    %621 = vst [vmem:[#allocation7 + $0x50] sm:$0xf] %v557
    %622 = vst [vmem:[#allocation7 + $0x54] sm:$0xf] %v558
    %623 = vst [vmem:[#allocation7 + $0x58] sm:$0xf] %v559
    %624 = vst [vmem:[#allocation7 + $0x5c] sm:$0xf] %v560
    %625 = vst [vmem:[#allocation7 + $0x60] sm:$0xf] %v561
    %626 = vst [vmem:[#allocation7 + $0x64] sm:$0xf] %v562
    %627 = vst [vmem:[#allocation7 + $0x68] sm:$0xf] %v563
    %628 = vst [vmem:[#allocation7 + $0x6c] sm:$0xf] %v564
    %629 = vst [vmem:[#allocation7 + $0x70] sm:$0xf] %v565
    %630 = vst [vmem:[#allocation7 + $0x74] sm:$0xf] %v566
    %631 = vst [vmem:[#allocation7 + $0x78] sm:$0xf] %v567
    %632 = vst [vmem:[#allocation7 + $0x7c] sm:$0xf] %v568
    %633 = vst [vmem:[#allocation7 + $0x80] sm:$0xf] %v569
    %634 = vst [vmem:[#allocation7 + $0x84] sm:$0xf] %v570
    %635 = vst [vmem:[#allocation7 + $0x88] sm:$0xf] %v571
    %636 = vst [vmem:[#allocation7 + $0x8c] sm:$0xf] %v572
    %637 = vst [vmem:[#allocation7 + $0x90] sm:$0xf] %v573
    %638 = vst [vmem:[#allocation7 + $0x94] sm:$0xf] %v574
    %639 = vst [vmem:[#allocation7 + $0x98] sm:$0xf] %v575
    %640 = vst [vmem:[#allocation7 + $0x9c] sm:$0xf] %v576
    %641 = vst [vmem:[#allocation7 + $0xa0] sm:$0xf] %v577
    %642 = vst [vmem:[#allocation7 + $0xa4] sm:$0xf] %v578
    %643 = vst [vmem:[#allocation7 + $0xa8] sm:$0xf] %v579
    %644 = vst [vmem:[#allocation7 + $0xac] sm:$0xf] %v580
    %645 = vst [vmem:[#allocation7 + $0xb0] sm:$0xf] %v581
    %646 = vst [vmem:[#allocation7 + $0xb4] sm:$0xf] %v582
    %647 = vst [vmem:[#allocation7 + $0xb8] sm:$0xf] %v583
    %648 = vst [vmem:[#allocation7 + $0xbc] sm:$0xf] %v584
    %649 = vst [vmem:[#allocation7 + $0xc0] sm:$0xf] %v585
    %650 = vst [vmem:[#allocation7 + $0xc4] sm:$0xf] %v586
    %651 = vst [vmem:[#allocation7 + $0xc8] sm:$0xf] %v587
    %652 = vst [vmem:[#allocation7 + $0xcc] sm:$0xf] %v588
    %653 = vst [vmem:[#allocation7 + $0xd0] sm:$0xf] %v589
    %654 = vst [vmem:[#allocation7 + $0xd4] sm:$0xf] %v590
    %655 = vst [vmem:[#allocation7 + $0xd8] sm:$0xf] %v591
    %656 = vst [vmem:[#allocation7 + $0xdc] sm:$0xf] %v592
    %657 = vst [vmem:[#allocation7 + $0xe0] sm:$0xf] %v593
    %658 = vst [vmem:[#allocation7 + $0xe4] sm:$0xf] %v594
    %659 = vst [vmem:[#allocation7 + $0xe8] sm:$0xf] %v595
    %660 = vst [vmem:[#allocation7 + $0xec] sm:$0xf] %v596
    %661 = vst [vmem:[#allocation7 + $0xf0] sm:$0xf] %v597
    %662 = vst [vmem:[#allocation7 + $0xf4] sm:$0xf] %v598
    %663 = vst [vmem:[#allocation7 + $0xf8] sm:$0xf] %v599
    %664 = vst [vmem:[#allocation7 + $0xfc] sm:$0xf] %v600
    %v665 = vadd.f32 %v378, %v380
    %v666 = vadd.f32 %v665, %v383
    %v667 = vadd.f32 %v666, %v385
    %v668 = vadd.f32 %v667, %v388
    %v669 = vadd.f32 %v668, %v390
    %v670 = vadd.f32 %v669, %v393
    %v671 = vadd.f32 %v670, %v395
    %v672 = vadd.f32 %v671, %v398
    %v673 = vadd.f32 %v672, %v400
    %v674 = vadd.f32 %v673, %v403
    %v675 = vadd.f32 %v674, %v405
    %v676 = vadd.f32 %v675, %v408
    %v677 = vadd.f32 %v676, %v410
    %v678 = vadd.f32 %v677, %v413
    %v679 = vadd.f32 %v678, %v415
    %v680 = vadd.f32 %v679, %v418
    %v681 = vadd.f32 %v680, %v420
    %v682 = vadd.f32 %v681, %v423
    %v683 = vadd.f32 %v682, %v425
    %v684 = vadd.f32 %v683, %v428
    %v685 = vadd.f32 %v684, %v430
    %v686 = vadd.f32 %v685, %v433
    %v687 = vadd.f32 %v686, %v435
    %v688 = vadd.f32 %v687, %v438
    %v689 = vadd.f32 %v688, %v440
    %v690 = vadd.f32 %v689, %v443
    %v691 = vadd.f32 %v690, %v445
    %v692 = vadd.f32 %v691, %v448
    %v693 = vadd.f32 %v692, %v450
    %v694 = vadd.f32 %v693, %v453
    %v695 = vadd.f32 %v694, %v455
    %v696 = vadd.f32 %v695, %v458
    %v697 = vadd.f32 %v696, %v460
    %v698 = vadd.f32 %v697, %v463
    %v699 = vadd.f32 %v698, %v465
    %v700 = vadd.f32 %v699, %v468
    %v701 = vadd.f32 %v700, %v470
    %v702 = vadd.f32 %v701, %v473
    %v703 = vadd.f32 %v702, %v475
    %v704 = vadd.f32 %v703, %v478
    %v705 = vadd.f32 %v704, %v480
    %v706 = vadd.f32 %v705, %v483
    %v707 = vadd.f32 %v706, %v485
    %v708 = vadd.f32 %v707, %v488
    %v709 = vadd.f32 %v708, %v490
    %v710 = vadd.f32 %v709, %v493
    %v711 = vadd.f32 %v710, %v495
    %v712 = vadd.f32 %v711, %v498
    %v713 = vadd.f32 %v712, %v500
    %v714 = vadd.f32 %v713, %v503
    %v715 = vadd.f32 %v714, %v505
    %v716 = vadd.f32 %v715, %v508
    %v717 = vadd.f32 %v716, %v510
    %v718 = vadd.f32 %v717, %v513
    %v719 = vadd.f32 %v718, %v515
    %v720 = vadd.f32 %v719, %v518
    %v721 = vadd.f32 %v720, %v520
    %v722 = vadd.f32 %v721, %v523
    %v723 = vadd.f32 %v722, %v525
    %v724 = vadd.f32 %v723, %v528
    %v725 = vadd.f32 %v724, %v530
    %v726 = vadd.f32 %v725, %v533
    %v727 = vadd.f32 %v726, %v535
    %v728 = vrot.slane %v727, 4
    %v729 = vadd.f32 %v727, %v728
    %v730 = vrot.slane %v729, 2
    %v731 = vadd.f32 %v729, %v730
    %v732 = vrot.slane %v731, 1
    %v733 = vadd.f32 %v731, %v732
    %v734 = vmul.f32 %v378, %v378
    %v735 = vmul.f32 %v380, %v380
    %v736 = vmul.f32 %v383, %v383
    %v737 = vmul.f32 %v385, %v385
    %v738 = vmul.f32 %v388, %v388
    %v739 = vmul.f32 %v390, %v390
    %v740 = vmul.f32 %v393, %v393
    %v741 = vmul.f32 %v395, %v395
    %v742 = vmul.f32 %v398, %v398
    %v743 = vmul.f32 %v400, %v400
    %v744 = vmul.f32 %v403, %v403
    %v745 = vmul.f32 %v405, %v405
    %v746 = vmul.f32 %v408, %v408
    %v747 = vmul.f32 %v410, %v410
    %v748 = vmul.f32 %v413, %v413
    %v749 = vmul.f32 %v415, %v415
    %v750 = vmul.f32 %v418, %v418
    %v751 = vmul.f32 %v420, %v420
    %v752 = vmul.f32 %v423, %v423
    %v753 = vmul.f32 %v425, %v425
    %v754 = vmul.f32 %v428, %v428
    %v755 = vmul.f32 %v430, %v430
    %v756 = vmul.f32 %v433, %v433
    %v757 = vmul.f32 %v435, %v435
    %v758 = vmul.f32 %v438, %v438
    %v759 = vmul.f32 %v440, %v440
    %v760 = vmul.f32 %v443, %v443
    %v761 = vmul.f32 %v445, %v445
    %v762 = vmul.f32 %v448, %v448
    %v763 = vmul.f32 %v450, %v450
    %v764 = vmul.f32 %v453, %v453
    %v765 = vmul.f32 %v455, %v455
    %v766 = vmul.f32 %v458, %v458
    %v767 = vmul.f32 %v460, %v460
    %v768 = vmul.f32 %v463, %v463
    %v769 = vmul.f32 %v465, %v465
    %v770 = vmul.f32 %v468, %v468
    %v771 = vmul.f32 %v470, %v470
    %v772 = vmul.f32 %v473, %v473
    %v773 = vmul.f32 %v475, %v475
    %v774 = vmul.f32 %v478, %v478
    %v775 = vmul.f32 %v480, %v480
    %v776 = vmul.f32 %v483, %v483
    %v777 = vmul.f32 %v485, %v485
    %v778 = vmul.f32 %v488, %v488
    %v779 = vmul.f32 %v490, %v490
    %v780 = vmul.f32 %v493, %v493
    %v781 = vmul.f32 %v495, %v495
    %v782 = vmul.f32 %v498, %v498
    %v783 = vmul.f32 %v500, %v500
    %v784 = vmul.f32 %v503, %v503
    %v785 = vmul.f32 %v505, %v505
    %v786 = vmul.f32 %v508, %v508
    %v787 = vmul.f32 %v510, %v510
    %v788 = vmul.f32 %v513, %v513
    %v789 = vmul.f32 %v515, %v515
    %v790 = vmul.f32 %v518, %v518
    %v791 = vmul.f32 %v520, %v520
    %v792 = vmul.f32 %v523, %v523
    %v793 = vmul.f32 %v525, %v525
    %v794 = vmul.f32 %v528, %v528
    %v795 = vmul.f32 %v530, %v530
    %v796 = vmul.f32 %v533, %v533
    %v797 = vmul.f32 %v535, %v535
    %v798 = vadd.f32 %v734, %v735
    %v799 = vadd.f32 %v798, %v736
    %v800 = vadd.f32 %v799, %v737
    %v801 = vadd.f32 %v800, %v738
    %v802 = vadd.f32 %v801, %v739
    %v803 = vadd.f32 %v802, %v740
    %v804 = vadd.f32 %v803, %v741
    %v805 = vadd.f32 %v804, %v742
    %v806 = vadd.f32 %v805, %v743
    %v807 = vadd.f32 %v806, %v744
    %v808 = vadd.f32 %v807, %v745
    %v809 = vadd.f32 %v808, %v746
    %v810 = vadd.f32 %v809, %v747
    %v811 = vadd.f32 %v810, %v748
    %v812 = vadd.f32 %v811, %v749
    %v813 = vadd.f32 %v812, %v750
    %v814 = vadd.f32 %v813, %v751
    %v815 = vadd.f32 %v814, %v752
    %v816 = vadd.f32 %v815, %v753
    %v817 = vadd.f32 %v816, %v754
    %v818 = vadd.f32 %v817, %v755
    %v819 = vadd.f32 %v818, %v756
    %v820 = vadd.f32 %v819, %v757
    %v821 = vadd.f32 %v820, %v758
    %v822 = vadd.f32 %v821, %v759
    %v823 = vadd.f32 %v822, %v760
    %v824 = vadd.f32 %v823, %v761
    %v825 = vadd.f32 %v824, %v762
    %v826 = vadd.f32 %v825, %v763
    %v827 = vadd.f32 %v826, %v764
    %v828 = vadd.f32 %v827, %v765
    %v829 = vadd.f32 %v828, %v766
    %v830 = vadd.f32 %v829, %v767
    %v831 = vadd.f32 %v830, %v768
    %v832 = vadd.f32 %v831, %v769
    %v833 = vadd.f32 %v832, %v770
    %v834 = vadd.f32 %v833, %v771
    %v835 = vadd.f32 %v834, %v772
    %v836 = vadd.f32 %v835, %v773
    %v837 = vadd.f32 %v836, %v774
    %v838 = vadd.f32 %v837, %v775
    %v839 = vadd.f32 %v838, %v776
    %v840 = vadd.f32 %v839, %v777
    %v841 = vadd.f32 %v840, %v778
    %v842 = vadd.f32 %v841, %v779
    %v843 = vadd.f32 %v842, %v780
    %v844 = vadd.f32 %v843, %v781
    %v845 = vadd.f32 %v844, %v782
    %v846 = vadd.f32 %v845, %v783
    %v847 = vadd.f32 %v846, %v784
    %v848 = vadd.f32 %v847, %v785
    %v849 = vadd.f32 %v848, %v786
    %v850 = vadd.f32 %v849, %v787
    %v851 = vadd.f32 %v850, %v788
    %v852 = vadd.f32 %v851, %v789
    %v853 = vadd.f32 %v852, %v790
    %v854 = vadd.f32 %v853, %v791
    %v855 = vadd.f32 %v854, %v792
    %v856 = vadd.f32 %v855, %v793
    %v857 = vadd.f32 %v856, %v794
    %v858 = vadd.f32 %v857, %v795
    %v859 = vadd.f32 %v858, %v796
    %v860 = vadd.f32 %v859, %v797
    %v861 = vrot.slane %v860, 4
    %v862 = vadd.f32 %v860, %v861
    %v863 = vrot.slane %v862, 2
    %v864 = vadd.f32 %v862, %v863
    %v865 = vrot.slane %v864, 1
    %v866 = vadd.f32 %v864, %v865
    %867 = vst [vmem:[#allocation8] sm:$0xff] %v733
    %868 = vst [vmem:[#allocation10] sm:$0xff] %v866
    // Predicated region
    $region18: #{tpu_custom_call.1} parent=1 // pred_check
      _
    $region19: #{tpu_custom_call.1} parent=1 // pred_check_branch
      %870 = sbr.rel (0) target = $region21
    $region20: #{tpu_custom_call.1} parent=1 // pred_region
      %872 = vsyncadd [#allocation4], 0
      %s873 = sshll.u32 [#allocation7], 4
      %s874 = int_to_ptr.vmem [resolvable:$true] %s873
      %s875 = sshll.u32 %s2, 4
      %s876 = int_to_ptr.hbm [resolvable:$true] %s875
      %881 = dma.vmem_to_hbm [thread:$0]  %s874, 4096, %s876, [#allocation4], 64, 64, 4
    $region21: #{tpu_custom_call.1} parent=1 // pred_fallthru
      _
    // Predicated region
    $region22: #{tpu_custom_call.1} parent=1 // pred_check
      _
    $region23: #{tpu_custom_call.1} parent=1 // pred_check_branch
      %883 = sbr.rel (0) target = $region25
    $region24: #{tpu_custom_call.1} parent=1 // pred_region
      %885 = vsyncadd [#allocation9], 0
      %s887 = sshll.u32 [#allocation8], 4
      %s888 = int_to_ptr.vmem [resolvable:$true] %s887
      %s889 = sshll.u32 %s3, 4
      %s890 = int_to_ptr.hbm [resolvable:$true] %s889
      %892 = dma.vmem_to_hbm [thread:$0]  %s888, 128, %s890, [#allocation9]
    $region25: #{tpu_custom_call.1} parent=1 // pred_fallthru
      _
    // Predicated region
    $region26: #{tpu_custom_call.1} parent=1 // pred_check
      _
    $region27: #{tpu_custom_call.1} parent=1 // pred_check_branch
      %894 = sbr.rel (0) target = $region29
    $region28: #{tpu_custom_call.1} parent=1 // pred_region
      %896 = vsyncadd [#allocation9], 0
      %s898 = sshll.u32 [#allocation10], 4
      %s899 = int_to_ptr.vmem [resolvable:$true] %s898
      %s900 = sshll.u32 %s4, 4
      %s901 = int_to_ptr.hbm [resolvable:$true] %s900
      %903 = dma.vmem_to_hbm [thread:$0]  %s899, 128, %s901, [#allocation9]
    $region29: #{tpu_custom_call.1} parent=1 // pred_fallthru
      _
    // Predicated region
    $region30: #{tpu_custom_call.1} parent=1 // pred_check
      _
    $region31: #{tpu_custom_call.1} parent=1 // pred_check_branch
      %905 = sbr.rel (0) target = $region33
    $region32: #{tpu_custom_call.1} parent=1 // pred_region
      %907 = dma.done [#allocation4], 4096
    $region33: #{tpu_custom_call.1} parent=1 // pred_fallthru
      _
    // Predicated region
    $region34: #{tpu_custom_call.1} parent=1 // pred_check
      _
    $region35: #{tpu_custom_call.1} parent=1 // pred_check_branch
      %909 = sbr.rel (0) target = $region37
    $region36: #{tpu_custom_call.1} parent=1 // pred_region
      %911 = dma.done [#allocation9], 128
    $region37: #{tpu_custom_call.1} parent=1 // pred_fallthru
      _
    // Predicated region
    $region38: #{tpu_custom_call.1} parent=1 // pred_check
      _
    $region39: #{tpu_custom_call.1} parent=1 // pred_check_branch
      %913 = sbr.rel (0) target = $region41
    $region40: #{tpu_custom_call.1} parent=1 // pred_region
      %915 = dma.done [#allocation9], 128
    $region41: #{tpu_custom_call.1} parent=1 // pred_fallthru
      _
    %916 = vsyncpa [#allocation3], 1
    %917 = vsyncpa [#allocation6], 1
    %918 = vsyncpa [#allocation4], 1
    %919 = vsyncpa [#allocation9], 1

</llo_original>
